<compile_context>
chip_gen: v5e
topology: v5e:2x2
jax: 0.10.0
libtpu: 0.0.40
codegen_flags: <defaults>
</compile_context>

<pallas_src>
import jax
import jax.numpy as jnp
from jax.experimental import pallas as pl
from jax.experimental.pallas import tpu as pltpu

LANE = 128     # lane width of a vreg (fast axis)
SUBLANE = 8    # sublane count (slow axis alignment)


def _round_up(n, m):
    return ((n + m - 1) // m) * m


def _param_rows(in_p, h_p):
    # Slab row layout: [w1 | b1(8 rows) | w2 | b2(8 rows) | w3 | b3(8 rows)]
    # Every section start is a multiple of 8 sublanes (in_p/h_p are multiples of 128).
    r_w1 = 0
    r_b1 = r_w1 + in_p
    r_w2 = r_b1 + SUBLANE
    r_b2 = r_w2 + h_p
    r_w3 = r_b2 + SUBLANE
    r_b3 = r_w3 + h_p
    total = r_b3 + SUBLANE
    return (r_w1, r_b1, r_w2, r_b2, r_w3, r_b3, total)


def _make_qnet_kernel(in_p, h_p, out_p):
    r_w1, r_b1, r_w2, r_b2, r_w3, r_b3, _ = _param_rows(in_p, h_p)

    def kernel(x_ref, p_ref, o_ref):
        # x tile: (TB, in_p), lane-dense.  Param slab stays VMEM-resident across grid.
        x = x_ref[...]
        w1 = p_ref[r_w1:r_w1 + in_p, 0:h_p]
        b1 = p_ref[r_b1:r_b1 + 1, 0:h_p]
        w2 = p_ref[r_w2:r_w2 + h_p, 0:h_p]
        b2 = p_ref[r_b2:r_b2 + 1, 0:h_p]
        w3 = p_ref[r_w3:r_w3 + h_p, 0:out_p]
        b3 = p_ref[r_b3:r_b3 + 1, 0:out_p]

        h1 = jnp.maximum(jnp.dot(x, w1, preferred_element_type=jnp.float32) + b1, 0.0)
        h2 = jnp.maximum(jnp.dot(h1, w2, preferred_element_type=jnp.float32) + b2, 0.0)
        out = jnp.dot(h2, w3, preferred_element_type=jnp.float32) + b3
        # Lane-dense (TB, out_p) store -> unmasked vst.
        o_ref[...] = out.astype(o_ref.dtype)

    return kernel


def init_qnet_params(key, input_dim, hidden_dim, output_dim):
    """PyTorch nn.Linear-style init (U[-1/sqrt(fan_in), +1/sqrt(fan_in)]).
    Weights stored as (in_features, out_features) — transposed vs torch's (out, in)."""
    def linear(k, fan_in, fan_out):
        kw, kb = jax.random.split(k)
        bound = 1.0 / jnp.sqrt(fan_in)
        w = jax.random.uniform(kw, (fan_in, fan_out), jnp.float32, -bound, bound)
        b = jax.random.uniform(kb, (1, fan_out), jnp.float32, -bound, bound)
        return w, b

    k1, k2, k3 = jax.random.split(key, 3)
    w1, b1 = linear(k1, input_dim, hidden_dim)
    w2, b2 = linear(k2, hidden_dim, hidden_dim)
    w3, b3 = linear(k3, hidden_dim, output_dim)
    return dict(w1=w1, b1=b1, w2=w2, b2=b2, w3=w3, b3=b3)


def pack_qnet_params(params, input_dim, hidden_dim, output_dim):
    """Zero-pad every feature dim to a multiple of 128 lanes and pack all six
    tensors into one contiguous (rows, lanes) f32 slab (single DMA per call)."""
    in_p = _round_up(input_dim, LANE)
    h_p = _round_up(hidden_dim, LANE)
    out_p = _round_up(output_dim, LANE)
    lanes = max(h_p, out_p)
    r_w1, r_b1, r_w2, r_b2, r_w3, r_b3, rows = _param_rows(in_p, h_p)

    slab = jnp.zeros((rows, lanes), jnp.float32)
    slab = slab.at[r_w1:r_w1 + input_dim, :hidden_dim].set(params["w1"])
    slab = slab.at[r_b1, :hidden_dim].set(params["b1"].reshape(-1))
    slab = slab.at[r_w2:r_w2 + hidden_dim, :hidden_dim].set(params["w2"])
    slab = slab.at[r_b2, :hidden_dim].set(params["b2"].reshape(-1))
    slab = slab.at[r_w3:r_w3 + hidden_dim, :output_dim].set(params["w3"])
    slab = slab.at[r_b3, :output_dim].set(params["b3"].reshape(-1))
    return slab


def qnet_forward(x, packed_params, input_dim, hidden_dim, output_dim, *, tb=128):
    """x: (B, input_dim) f32. packed_params: slab from pack_qnet_params.
    Returns (B, output_dim) f32."""
    B = x.shape[0]
    in_p = _round_up(input_dim, LANE)
    h_p = _round_up(hidden_dim, LANE)
    out_p = _round_up(output_dim, LANE)

    # Don't over-pad tiny batches; keep the batch tile a multiple of 8 sublanes.
    tb = max(SUBLANE, min(tb, _round_up(B, SUBLANE)))
    b_pad = _round_up(B, tb)

    # Lane-dense, tile-aligned input: pad batch to a multiple of TB, features to 128.
    x_p = jnp.zeros((b_pad, in_p), jnp.float32).at[:B, :input_dim].set(x)

    kernel = _make_qnet_kernel(in_p, h_p, out_p)
    grid = (b_pad // tb,)

    out_padded = pl.pallas_call(
        kernel,
        out_shape=jax.ShapeDtypeStruct((b_pad, out_p), jnp.float32),
        grid=grid,
        in_specs=[
            # x tiled along batch: pipelined HBM<->VMEM DMA per grid step.
            pl.BlockSpec((tb, in_p), lambda i: (i, 0)),
            # single packed param slab, constant index_map -> fetched once, VMEM-resident.
            pl.BlockSpec(packed_params.shape, lambda i: (0, 0)),
        ],
        out_specs=pl.BlockSpec((tb, out_p), lambda i: (i, 0)),
        compiler_params=pltpu.CompilerParams(
            # Batch tiles are independent -> shard across the 2 TensorCores on v7x.
            dimension_semantics=("parallel",),
        ),
    )(x_p, packed_params)

    return out_padded[:B, :output_dim]


def qnet_reference(x, params):
    h = jnp.maximum(x @ params["w1"] + params["b1"], 0.0)
    h = jnp.maximum(h @ params["w2"] + params["b2"], 0.0)
    return h @ params["w3"] + params["b3"]


if __name__ == "__main__":
    # DQN-style shapes: CartPole (state_dim=4, actions=2), hidden=32.
    # Process a whole replay batch per pallas_call to amortize launch/DMA overhead.
    input_dim, hidden_dim, output_dim = 4, 32, 2
    batch = 256

    key = jax.random.PRNGKey(0)
    kx, kp = jax.random.split(key)
    x = jax.random.normal(kx, (batch, input_dim), jnp.float32)
    params = init_qnet_params(kp, input_dim, hidden_dim, output_dim)
    packed = pack_qnet_params(params, input_dim, hidden_dim, output_dim)

    out = qnet_forward(x, packed, input_dim, hidden_dim, output_dim, tb=128)
    out = jax.block_until_ready(out)

    ref = qnet_reference(x, params)
    assert out.shape == (batch, output_dim)
    assert jnp.allclose(out, ref, atol=1e-4, rtol=1e-4), "Pallas output mismatch vs reference"

    print("KERNEL_OK")
</pallas_src>

<mosaic_0001>
module attributes {stable_mosaic.version = 11 : i64} {
  func.func @kernel(%arg0: i32, %arg1: memref<128x128xf32, #tpu.memory_space<vmem>>, %arg2: memref<408x128xf32, #tpu.memory_space<vmem>>, %arg3: memref<128x128xf32, #tpu.memory_space<vmem>>) attributes {dimension_semantics = [#tpu.dimension_semantics<parallel>], iteration_bounds = array<i64: 2>, scalar_prefetch = 0 : i64, scratch_operands = 0 : i64, tpu.core_type = #tpu.core_type<tc>, window_params = [{transform_indices = @transform_0, window_bounds = array<i64: 128, 128>}, {pipeline_mode = #tpu.pipeline_mode<synchronous>, transform_indices = @transform_1, window_bounds = array<i64: 408, 128>}, {transform_indices = @transform_2, window_bounds = array<i64: 128, 128>}]} {
    %c0 = arith.constant 0 : index
    %c0_0 = arith.constant 0 : index
    %0 = vector.load %arg1[%c0, %c0_0] : memref<128x128xf32, #tpu.memory_space<vmem>>, vector<128x128xf32>
    %c0_1 = arith.constant 0 : index
    %c0_2 = arith.constant 0 : index
    %1 = vector.load %arg2[%c0_1, %c0_2] : memref<408x128xf32, #tpu.memory_space<vmem>>, vector<128x128xf32>
    %c128 = arith.constant 128 : index
    %c0_3 = arith.constant 0 : index
    %2 = vector.load %arg2[%c128, %c0_3] : memref<408x128xf32, #tpu.memory_space<vmem>>, vector<1x128xf32>
    %c136 = arith.constant 136 : index
    %c0_4 = arith.constant 0 : index
    %3 = vector.load %arg2[%c136, %c0_4] : memref<408x128xf32, #tpu.memory_space<vmem>>, vector<128x128xf32>
    %c264 = arith.constant 264 : index
    %c0_5 = arith.constant 0 : index
    %4 = vector.load %arg2[%c264, %c0_5] : memref<408x128xf32, #tpu.memory_space<vmem>>, vector<1x128xf32>
    %c272 = arith.constant 272 : index
    %c0_6 = arith.constant 0 : index
    %5 = vector.load %arg2[%c272, %c0_6] : memref<408x128xf32, #tpu.memory_space<vmem>>, vector<128x128xf32>
    %c400 = arith.constant 400 : index
    %c0_7 = arith.constant 0 : index
    %6 = vector.load %arg2[%c400, %c0_7] : memref<408x128xf32, #tpu.memory_space<vmem>>, vector<1x128xf32>
    %cst = arith.constant dense<0.000000e+00> : vector<128x128xf32>
    %7 = tpu.matmul %0, %1, %cst {dimension_numbers = #tpu.dot_dimension_numbers<[1], [0], [0], [1], [0, 0, 1, 1], [], []>} : vector<128x128xf32>, vector<128x128xf32>, vector<128x128xf32> -> vector<128x128xf32>
    %8 = vector.broadcast %2 : vector<1x128xf32> to vector<128x128xf32>
    %9 = arith.addf %7, %8 : vector<128x128xf32>
    %cst_8 = arith.constant 0.000000e+00 : f32
    %10 = vector.broadcast %cst_8 : f32 to vector<128x128xf32>
    %11 = arith.maximumf %9, %10 : vector<128x128xf32>
    %cst_9 = arith.constant dense<0.000000e+00> : vector<128x128xf32>
    %12 = tpu.matmul %11, %3, %cst_9 {dimension_numbers = #tpu.dot_dimension_numbers<[1], [0], [0], [1], [0, 0, 1, 1], [], []>} : vector<128x128xf32>, vector<128x128xf32>, vector<128x128xf32> -> vector<128x128xf32>
    %13 = vector.broadcast %4 : vector<1x128xf32> to vector<128x128xf32>
    %14 = arith.addf %12, %13 : vector<128x128xf32>
    %cst_10 = arith.constant 0.000000e+00 : f32
    %15 = vector.broadcast %cst_10 : f32 to vector<128x128xf32>
    %16 = arith.maximumf %14, %15 : vector<128x128xf32>
    %cst_11 = arith.constant dense<0.000000e+00> : vector<128x128xf32>
    %17 = tpu.matmul %16, %5, %cst_11 {dimension_numbers = #tpu.dot_dimension_numbers<[1], [0], [0], [1], [0, 0, 1, 1], [], []>} : vector<128x128xf32>, vector<128x128xf32>, vector<128x128xf32> -> vector<128x128xf32>
    %18 = vector.broadcast %6 : vector<1x128xf32> to vector<128x128xf32>
    %19 = arith.addf %17, %18 : vector<128x128xf32>
    %c0_12 = arith.constant 0 : index
    %c0_13 = arith.constant 0 : index
    %20 = vector.load %arg3[%c0_12, %c0_13] : memref<128x128xf32, #tpu.memory_space<vmem>>, vector<128x128xf32>
    tpu.vector_store %arg3[%c0_12, %c0_13], %19 {strides = array<i32>} : memref<128x128xf32, #tpu.memory_space<vmem>>, vector<128x128xf32>,
    return
  }
  func.func @transform_0(%arg0: i32) -> (i32, i32) {
    %c0_i32 = arith.constant 0 : i32
    %c0_i32_0 = arith.constant 0 : i32
    return %arg0, %c0_i32 : i32, i32
  }
  func.func @transform_1(%arg0: i32) -> (i32, i32) {
    %c0_i32 = arith.constant 0 : i32
    %c0_i32_0 = arith.constant 0 : i32
    %c0_i32_1 = arith.constant 0 : i32
    return %c0_i32, %c0_i32_0 : i32, i32
  }
  func.func @transform_2(%arg0: i32) -> (i32, i32) {
    %c0_i32 = arith.constant 0 : i32
    %c0_i32_0 = arith.constant 0 : i32
    return %arg0, %c0_i32 : i32, i32
  }
}

</mosaic_0001>

<llo_original>
// kernel: tpu_custom_call.1
$region0: #{tpu_custom_call.1}
  #allocation0 [shape = 'u32[]', space=smem, size = 0x4, offset = 0x4, fixed_abs, tag = 'smem constant byte address 0x4 - core index']
  #allocation1 [shape = 'u32[72,128]{1,0:T(1,128)}', space=vmem, size = 0x9000, scoped, tag = 'internal scratch']
  %s0 = inlined_call_operand.hbm [shape: f32[256,128], index: 0, kind: input, shape index: {}]
  %s1 = inlined_call_operand.hbm [shape: f32[408,128], index: 1, kind: input, shape index: {}]
  %s2 = inlined_call_operand.hbm [shape: f32[256,128], index: 2, kind: output, shape index: {}]
  %s3 = sld [smem:[#allocation0]]
  $region49: #{tpu_custom_call.1} parent=0
    _
  %s5 = ssub.s32 1, %s3
  %s6 = scalar_select 0, %s5, %s3
  $region1: #{tpu_custom_call.1} parent=0
    #allocation2 [shape = 'u8[131072]{0}', space=vmem, size = 0x20000, scoped, tag = 'input window, operand 0']
    #allocation3 [shape = 's32[2]{0}', space=sflag, size = 0x8, scoped, tag = 'scoped memory for tpu_custom_call.1']
    #allocation4 [shape = 's32[2]{0}', space=sflag, size = 0x8, scoped, tag = 'scoped memory for tpu_custom_call.1']
    #allocation5 [shape = 'u8[208896]{0}', space=vmem, size = 0x33000, scoped, tag = 'input window, operand 1, single buffered']
    #allocation6 [shape = 's32[1]{0}', space=sflag, size = 0x4, scoped, tag = 'scoped memory for tpu_custom_call.1']
    #allocation7 [shape = 'u8[131072]{0}', space=vmem, size = 0x20000, scoped, tag = 'output window, operand 0']
    %7 = vsyncpa [#allocation3], 0
    %s8 = scalar_lea.sflag [#allocation3], 1
    %9 = vsyncpa %s8, 0
    %10 = vsyncpa [#allocation6], 0
    %11 = vsyncpa [#allocation4], 0
    %s12 = scalar_lea.sflag [#allocation4], 1
    %13 = vsyncpa %s12, 0
    loop: start=0, step=1, limit=4
    $region2: #{tpu_custom_call.1} parent=1 // loop_pre_header
      _
    $region3: #{tpu_custom_call.1} parent=1 // loop_header
      %s15 = sphi 0, %s19
      %p16 = scmp.ge.s32.totalorder %s15, 4
      %s25 = sphi 0, %s27
      %s28 = sphi 0, %s25
      %s29 = sphi 0, %s28
      %s45 = sphi 0, %s29
      %s49 = sphi 0, %s49
      %s51 = sphi 0, %s49
      %s52 = sphi 0, %s51
      %s66 = sphi 0, %s52
      %s72 = sphi 0, %s74
      %s75 = sphi 0, %s72
      %s76 = sphi 0, %s75
      %s92 = sphi 0, %s76
    $region4: #{tpu_custom_call.1} parent=1 // loop_header_branch
      %18 = sbr.rel (%p16) target = $region8
    $region5: #{tpu_custom_call.1} parent=1 // loop_body
      %s20 = ssub.s32 %s15, 1
      %s21 = ssub.s32 %s15, 2
      %s22 = sadd.s32 %s15, 1
      %s23 = ssub.s32 %s15, %s22
      %p24 = scmp.eq.s32.totalorder %s23, 0
      %s26 = sadd.s32 %s25, 1
      %s27 = scalar_select %p24, %s25, %s26
      %p30 = pneg %p24
      %p31 = scmp.eq.s32.totalorder %s15, 1
      %p32 = por %p30, %p31
      %p33 = scmp.ne.s32.totalorder %s25, %s28
      %p34 = scmp.eq.s32.totalorder %s15, 0
      %p35 = por %p33, %p34
      %p36 = scmp.ne.s32.totalorder %s25, %s28
      %p37 = scmp.eq.s32.totalorder %s20, 1
      %p38 = por %p36, %p37
      %p39 = scmp.ne.s32.totalorder %s28, %s29
      %p40 = scmp.eq.s32.totalorder %s20, 0
      %p41 = por %p39, %p40
      %p42 = scmp.ne.s32.totalorder %s28, %s29
      %p43 = scmp.eq.s32.totalorder %s21, 1
      %p44 = por %p42, %p43
      %p46 = scmp.ne.s32.totalorder %s29, %s45
      %p47 = scmp.eq.s32.totalorder %s21, 0
      %p48 = por %p46, %p47
      %s50 = sadd.s32 %s49, 1
      %p53 = scmp.eq.s32.totalorder %s15, 1
      %p54 = scmp.ne.s32.totalorder %s49, %s51
      %p55 = scmp.eq.s32.totalorder %s15, 0
      %p56 = por %p54, %p55
      %p57 = scmp.ne.s32.totalorder %s49, %s51
      %p58 = scmp.eq.s32.totalorder %s20, 1
      %p59 = por %p57, %p58
      %p60 = scmp.ne.s32.totalorder %s51, %s52
      %p61 = scmp.eq.s32.totalorder %s20, 0
      %p62 = por %p60, %p61
      %p63 = scmp.ne.s32.totalorder %s51, %s52
      %p64 = scmp.eq.s32.totalorder %s21, 1
      %p65 = por %p63, %p64
      %p67 = scmp.ne.s32.totalorder %s52, %s66
      %p68 = scmp.eq.s32.totalorder %s21, 0
      %p69 = por %p67, %p68
      %s70 = ssub.s32 %s15, %s22
      %p71 = scmp.eq.s32.totalorder %s70, 0
      %s73 = sadd.s32 %s72, 1
      %s74 = scalar_select %p71, %s72, %s73
      %p77 = pneg %p71
      %p78 = scmp.eq.s32.totalorder %s15, 1
      %p79 = por %p77, %p78
      %p80 = scmp.ne.s32.totalorder %s72, %s75
      %p81 = scmp.eq.s32.totalorder %s15, 0
      %p82 = por %p80, %p81
      %p83 = scmp.ne.s32.totalorder %s72, %s75
      %p84 = scmp.eq.s32.totalorder %s20, 1
      %p85 = por %p83, %p84
      %p86 = scmp.ne.s32.totalorder %s75, %s76
      %p87 = scmp.eq.s32.totalorder %s20, 0
      %p88 = por %p86, %p87
      %p89 = scmp.ne.s32.totalorder %s75, %s76
      %p90 = scmp.eq.s32.totalorder %s21, 1
      %p91 = por %p89, %p90
      %p93 = scmp.ne.s32.totalorder %s76, %s92
      %p94 = scmp.eq.s32.totalorder %s21, 0
      %p95 = por %p93, %p94
      %p96 = scmp.le.s32.totalorder 1, %s15
      %p97 = scmp.lt.s32.totalorder %s15, 3
      %p98 = pnand %p96, %p97
      %p99 = pneg %p98
      // Predicated region
      $region9: #{tpu_custom_call.1} parent=5 // pred_check
        _
      $region10: #{tpu_custom_call.1} parent=5 // pred_check_branch
        %101 = sbr.rel (%p98) target = $region12
      $region11: #{tpu_custom_call.1} parent=5 // pred_region
        %s102 = ssub.s32 %s15, 1
        // Predicated region
        $region13: #{tpu_custom_call.1} parent=11 // pred_check
          %p103 = pneg %p62
        $region14: #{tpu_custom_call.1} parent=11 // pred_check_branch
          %105 = sbr.rel (%p103) target = $region16
        $region15: #{tpu_custom_call.1} parent=11 // pred_region
          %107 = vsyncadd [#allocation6], 0
          %s108 = sshll.u32 %s1, 4
          %s109 = int_to_ptr.hbm [resolvable:$true] %s108
          %s110 = sshll.u32 [#allocation5], 4
          %s111 = int_to_ptr.vmem [resolvable:$true] %s110
          %116 = dma.hbm_to_vmem [thread:$0]  %s109, 6528, %s111, [#allocation6], 128, 128, 8
        $region16: #{tpu_custom_call.1} parent=11 // pred_fallthru
          _
      $region12: #{tpu_custom_call.1} parent=5 // pred_fallthru
        _
      %p117 = scmp.lt.s32.totalorder %s15, 2
      // Predicated region
      $region17: #{tpu_custom_call.1} parent=5 // pred_check
        %p118 = pneg %p117
      $region18: #{tpu_custom_call.1} parent=5 // pred_check_branch
        %120 = sbr.rel (%p118) target = $region20
      $region19: #{tpu_custom_call.1} parent=5 // pred_region
        // Predicated region
        $region21: #{tpu_custom_call.1} parent=19 // pred_check
          %p121 = pneg %p35
        $region22: #{tpu_custom_call.1} parent=19 // pred_check_branch
          %123 = sbr.rel (%p121) target = $region24
        $region23: #{tpu_custom_call.1} parent=19 // pred_region
          %s124 = sand.u32 %s25, 1
          %s125 = scalar_lea.sflag [#allocation3], %s124
          %s126 = sand.u32 %s25, 1
          %s127 = smul.addr %s126, 128
          %s128 = scalar_lea.vmem [#allocation2], %s127
          %s129 = smul.u32 16, %s15
          %131 = vsyncadd %s125, 0
          %s132 = smul.addr %s129, 8
          %s133 = scalar_lea.hbm %s0, %s132
          %s134 = sshll.u32 %s133, 4
          %s135 = int_to_ptr.hbm [resolvable:$true] %s134
          %s136 = sshll.u32 %s128, 4
          %s137 = int_to_ptr.vmem [resolvable:$true] %s136
          %142 = dma.hbm_to_vmem [thread:$0]  %s135, 2048, %s137, %s125, 128, 128, 8
        $region24: #{tpu_custom_call.1} parent=19 // pred_fallthru
          _
      $region20: #{tpu_custom_call.1} parent=5 // pred_fallthru
        _
      %p143 = scmp.le.s32.totalorder 1, %s15
      %p144 = scmp.lt.s32.totalorder %s15, 3
      %p145 = pnand %p143, %p144
      %p146 = pneg %p145
      // Predicated region
      $region25: #{tpu_custom_call.1} parent=5 // pred_check
        _
      $region26: #{tpu_custom_call.1} parent=5 // pred_check_branch
        %148 = sbr.rel (%p145) target = $region28
      $region27: #{tpu_custom_call.1} parent=5 // pred_region
        %s149 = ssub.s32 %s15, 1
        %s150 = sand.u32 %s28, 1
        %s151 = scalar_lea.sflag [#allocation3], %s150
        %s152 = sand.u32 %s28, 1
        %s153 = smul.addr %s152, 128
        %s154 = scalar_lea.vmem [#allocation2], %s153
        // Predicated region
        $region29: #{tpu_custom_call.1} parent=27 // pred_check
          %p155 = pneg %p41
        $region30: #{tpu_custom_call.1} parent=27 // pred_check_branch
          %157 = sbr.rel (%p155) target = $region32
        $region31: #{tpu_custom_call.1} parent=27 // pred_region
          %159 = dma.done %s151, 2048
        $region32: #{tpu_custom_call.1} parent=27 // pred_fallthru
          _
        // Predicated region
        $region33: #{tpu_custom_call.1} parent=27 // pred_check
          %p160 = pneg %p62
        $region34: #{tpu_custom_call.1} parent=27 // pred_check_branch
          %162 = sbr.rel (%p160) target = $region36
        $region35: #{tpu_custom_call.1} parent=27 // pred_region
          %164 = dma.done [#allocation6], 6528
        $region36: #{tpu_custom_call.1} parent=27 // pred_fallthru
          _
        %s165 = sand.u32 %s28, 1
        %s166 = scalar_lea.sflag [#allocation3], %s165
        %s167 = sand.u32 %s28, 1
        %s168 = smul.addr %s167, 128
        %s169 = scalar_lea.vmem [#allocation2], %s168
        %p170 = pneg %p41
        %p171 = pneg %p38
        %p172 = pneg %p62
        %p173 = pneg %p59
        %p174 = pneg %p88
        %p175 = pneg %p85
        %s176 = sand.u32 %s75, 1
        %s177 = scalar_lea.sflag [#allocation4], %s176
        %s178 = sand.u32 %s75, 1
        %s179 = smul.addr %s178, 128
        %s180 = scalar_lea.vmem [#allocation7], %s179
        %s181 = smul.u32 16, %s20
        %s182 = smul.u32 16, %s20
        %v183 = vld [vmem:[%s154] sm:$0xff]
        %v184 = vld [vmem:[%s154 + $0x8] sm:$0xff]
        %v185 = vld [vmem:[%s154 + $0x10] sm:$0xff]
        %v186 = vld [vmem:[%s154 + $0x18] sm:$0xff]
        %v187 = vld [vmem:[%s154 + $0x20] sm:$0xff]
        %v188 = vld [vmem:[%s154 + $0x28] sm:$0xff]
        %v189 = vld [vmem:[%s154 + $0x30] sm:$0xff]
        %v190 = vld [vmem:[%s154 + $0x38] sm:$0xff]
        %v191 = vld [vmem:[%s154 + $0x40] sm:$0xff]
        %v192 = vld [vmem:[%s154 + $0x48] sm:$0xff]
        %v193 = vld [vmem:[%s154 + $0x50] sm:$0xff]
        %v194 = vld [vmem:[%s154 + $0x58] sm:$0xff]
        %v195 = vld [vmem:[%s154 + $0x60] sm:$0xff]
        %v196 = vld [vmem:[%s154 + $0x68] sm:$0xff]
        %v197 = vld [vmem:[%s154 + $0x70] sm:$0xff]
        %v198 = vld [vmem:[%s154 + $0x78] sm:$0xff]
        %v199 = vld [vmem:[#allocation5] sm:$0xff]
        %v200 = vld [vmem:[#allocation5 + $0x8] sm:$0xff]
        %v201 = vld [vmem:[#allocation5 + $0x10] sm:$0xff]
        %v202 = vld [vmem:[#allocation5 + $0x18] sm:$0xff]
        %v203 = vld [vmem:[#allocation5 + $0x20] sm:$0xff]
        %v204 = vld [vmem:[#allocation5 + $0x28] sm:$0xff]
        %v205 = vld [vmem:[#allocation5 + $0x30] sm:$0xff]
        %v206 = vld [vmem:[#allocation5 + $0x38] sm:$0xff]
        %v207 = vld [vmem:[#allocation5 + $0x40] sm:$0xff]
        %v208 = vld [vmem:[#allocation5 + $0x48] sm:$0xff]
        %v209 = vld [vmem:[#allocation5 + $0x50] sm:$0xff]
        %v210 = vld [vmem:[#allocation5 + $0x58] sm:$0xff]
        %v211 = vld [vmem:[#allocation5 + $0x60] sm:$0xff]
        %v212 = vld [vmem:[#allocation5 + $0x68] sm:$0xff]
        %v213 = vld [vmem:[#allocation5 + $0x70] sm:$0xff]
        %v214 = vld [vmem:[#allocation5 + $0x78] sm:$0xff]
        %v215 = vld [vmem:[#allocation5 + $0x80] sm:$0x1]
        %v216 = vld [vmem:[#allocation5 + $0x88] sm:$0xff]
        %v217 = vld [vmem:[#allocation5 + $0x90] sm:$0xff]
        %v218 = vld [vmem:[#allocation5 + $0x98] sm:$0xff]
        %v219 = vld [vmem:[#allocation5 + $0xa0] sm:$0xff]
        %v220 = vld [vmem:[#allocation5 + $0xa8] sm:$0xff]
        %v221 = vld [vmem:[#allocation5 + $0xb0] sm:$0xff]
        %v222 = vld [vmem:[#allocation5 + $0xb8] sm:$0xff]
        %v223 = vld [vmem:[#allocation5 + $0xc0] sm:$0xff]
        %v224 = vld [vmem:[#allocation5 + $0xc8] sm:$0xff]
        %v225 = vld [vmem:[#allocation5 + $0xd0] sm:$0xff]
        %v226 = vld [vmem:[#allocation5 + $0xd8] sm:$0xff]
        %v227 = vld [vmem:[#allocation5 + $0xe0] sm:$0xff]
        %v228 = vld [vmem:[#allocation5 + $0xe8] sm:$0xff]
        %v229 = vld [vmem:[#allocation5 + $0xf0] sm:$0xff]
        %v230 = vld [vmem:[#allocation5 + $0xf8] sm:$0xff]
        %v231 = vld [vmem:[#allocation5 + $0x100] sm:$0xff]
        %v232 = vld [vmem:[#allocation5 + $0x108] sm:$0x1]
        %v233 = vld [vmem:[#allocation5 + $0x110] sm:$0xff]
        %v234 = vld [vmem:[#allocation5 + $0x118] sm:$0xff]
        %v235 = vld [vmem:[#allocation5 + $0x120] sm:$0xff]
        %v236 = vld [vmem:[#allocation5 + $0x128] sm:$0xff]
        %v237 = vld [vmem:[#allocation5 + $0x130] sm:$0xff]
        %v238 = vld [vmem:[#allocation5 + $0x138] sm:$0xff]
        %v239 = vld [vmem:[#allocation5 + $0x140] sm:$0xff]
        %v240 = vld [vmem:[#allocation5 + $0x148] sm:$0xff]
        %v241 = vld [vmem:[#allocation5 + $0x150] sm:$0xff]
        %v242 = vld [vmem:[#allocation5 + $0x158] sm:$0xff]
        %v243 = vld [vmem:[#allocation5 + $0x160] sm:$0xff]
        %v244 = vld [vmem:[#allocation5 + $0x168] sm:$0xff]
        %v245 = vld [vmem:[#allocation5 + $0x170] sm:$0xff]
        %v246 = vld [vmem:[#allocation5 + $0x178] sm:$0xff]
        %v247 = vld [vmem:[#allocation5 + $0x180] sm:$0xff]
        %v248 = vld [vmem:[#allocation5 + $0x188] sm:$0xff]
        %v249 = vld [vmem:[#allocation5 + $0x190] sm:$0x1]
        %v250 = vperm.slane %v215, 0
        %251 = vmatpush.msra.mxu0 %v214
        %252 = vmatpush.msra.mxu0 %v213
        %253 = vmatpush.msra.mxu0 %v212
        %254 = vmatpush.msra.mxu0 %v211
        %255 = vmatpush.msra.mxu0 %v210
        %256 = vmatpush.msra.mxu0 %v209
        %257 = vmatpush.msra.mxu0 %v208
        %258 = vmatpush.msra.mxu0 %v207
        %259 = vmatpush.msra.mxu0 %v206
        %260 = vmatpush.msra.mxu0 %v205
        %261 = vmatpush.msra.mxu0 %v204
        %262 = vmatpush.msra.mxu0 %v203
        %263 = vmatpush.msra.mxu0 %v202
        %264 = vmatpush.msra.mxu0 %v201
        %265 = vmatpush.msra.mxu0 %v200
        %266 = vmatpush.msra.mxu0 %v199
        %267 = vmatmul.f32.gmra.mxu0 %v183
        %v268 = vpop.f32.mrf.mxu0
        %v269 = vadd.f32 %v250, %v268
        %270 = vmatmul.f32.gmra.mxu0 %v184
        %v271 = vpop.f32.mrf.mxu0
        %v272 = vadd.f32 %v250, %v271
        %273 = vmatmul.f32.gmra.mxu0 %v185
        %v274 = vpop.f32.mrf.mxu0
        %v275 = vadd.f32 %v250, %v274
        %276 = vmatmul.f32.gmra.mxu0 %v186
        %v277 = vpop.f32.mrf.mxu0
        %v278 = vadd.f32 %v250, %v277
        %279 = vmatmul.f32.gmra.mxu0 %v187
        %v280 = vpop.f32.mrf.mxu0
        %v281 = vadd.f32 %v250, %v280
        %282 = vmatmul.f32.gmra.mxu0 %v188
        %v283 = vpop.f32.mrf.mxu0
        %v284 = vadd.f32 %v250, %v283
        %285 = vmatmul.f32.gmra.mxu0 %v189
        %v286 = vpop.f32.mrf.mxu0
        %v287 = vadd.f32 %v250, %v286
        %288 = vmatmul.f32.gmra.mxu0 %v190
        %v289 = vpop.f32.mrf.mxu0
        %v290 = vadd.f32 %v250, %v289
        %291 = vmatmul.f32.gmra.mxu0 %v191
        %v292 = vpop.f32.mrf.mxu0
        %v293 = vadd.f32 %v250, %v292
        %294 = vmatmul.f32.gmra.mxu0 %v192
        %v295 = vpop.f32.mrf.mxu0
        %v296 = vadd.f32 %v250, %v295
        %297 = vmatmul.f32.gmra.mxu0 %v193
        %v298 = vpop.f32.mrf.mxu0
        %v299 = vadd.f32 %v250, %v298
        %300 = vmatmul.f32.gmra.mxu0 %v194
        %v301 = vpop.f32.mrf.mxu0
        %v302 = vadd.f32 %v250, %v301
        %303 = vmatmul.f32.gmra.mxu0 %v195
        %v304 = vpop.f32.mrf.mxu0
        %v305 = vadd.f32 %v250, %v304
        %306 = vmatmul.f32.gmra.mxu0 %v196
        %v307 = vpop.f32.mrf.mxu0
        %v308 = vadd.f32 %v250, %v307
        %309 = vmatmul.f32.gmra.mxu0 %v197
        %v310 = vpop.f32.mrf.mxu0
        %v311 = vadd.f32 %v250, %v310
        %312 = vmatmul.f32.gmra.mxu0 %v198
        %v313 = vpop.f32.mrf.mxu0
        %v314 = vadd.f32 %v250, %v313
        %315 = vdwg.mxu0
        %v316 = vmax.f32 %v269, 0.0
        %v317 = vmax.f32 %v272, 0.0
        %v318 = vmax.f32 %v275, 0.0
        %v319 = vmax.f32 %v278, 0.0
        %v320 = vmax.f32 %v281, 0.0
        %v321 = vmax.f32 %v284, 0.0
        %v322 = vmax.f32 %v287, 0.0
        %v323 = vmax.f32 %v290, 0.0
        %v324 = vmax.f32 %v293, 0.0
        %v325 = vmax.f32 %v296, 0.0
        %v326 = vmax.f32 %v299, 0.0
        %v327 = vmax.f32 %v302, 0.0
        %v328 = vmax.f32 %v305, 0.0
        %v329 = vmax.f32 %v308, 0.0
        %v330 = vmax.f32 %v311, 0.0
        %v331 = vmax.f32 %v314, 0.0
        %v332 = vperm.slane %v232, 0
        %333 = vmatpush.msra.mxu0 %v231
        %334 = vmatpush.msra.mxu0 %v230
        %335 = vmatpush.msra.mxu0 %v229
        %336 = vmatpush.msra.mxu0 %v228
        %337 = vmatpush.msra.mxu0 %v227
        %338 = vmatpush.msra.mxu0 %v226
        %339 = vmatpush.msra.mxu0 %v225
        %340 = vmatpush.msra.mxu0 %v224
        %341 = vmatpush.msra.mxu0 %v223
        %342 = vmatpush.msra.mxu0 %v222
        %343 = vmatpush.msra.mxu0 %v221
        %344 = vmatpush.msra.mxu0 %v220
        %345 = vmatpush.msra.mxu0 %v219
        %346 = vmatpush.msra.mxu0 %v218
        %347 = vmatpush.msra.mxu0 %v217
        %348 = vmatpush.msra.mxu0 %v216
        %349 = vmatmul.f32.gmra.mxu0 %v316
        %v350 = vpop.f32.mrf.mxu0
        %v351 = vadd.f32 %v332, %v350
        %352 = vmatmul.f32.gmra.mxu0 %v317
        %v353 = vpop.f32.mrf.mxu0
        %v354 = vadd.f32 %v332, %v353
        %355 = vmatmul.f32.gmra.mxu0 %v318
        %v356 = vpop.f32.mrf.mxu0
        %v357 = vadd.f32 %v332, %v356
        %358 = vmatmul.f32.gmra.mxu0 %v319
        %v359 = vpop.f32.mrf.mxu0
        %v360 = vadd.f32 %v332, %v359
        %361 = vmatmul.f32.gmra.mxu0 %v320
        %v362 = vpop.f32.mrf.mxu0
        %v363 = vadd.f32 %v332, %v362
        %364 = vmatmul.f32.gmra.mxu0 %v321
        %v365 = vpop.f32.mrf.mxu0
        %v366 = vadd.f32 %v332, %v365
        %367 = vmatmul.f32.gmra.mxu0 %v322
        %v368 = vpop.f32.mrf.mxu0
        %v369 = vadd.f32 %v332, %v368
        %370 = vmatmul.f32.gmra.mxu0 %v323
        %v371 = vpop.f32.mrf.mxu0
        %v372 = vadd.f32 %v332, %v371
        %373 = vmatmul.f32.gmra.mxu0 %v324
        %v374 = vpop.f32.mrf.mxu0
        %v375 = vadd.f32 %v332, %v374
        %376 = vmatmul.f32.gmra.mxu0 %v325
        %v377 = vpop.f32.mrf.mxu0
        %v378 = vadd.f32 %v332, %v377
        %379 = vmatmul.f32.gmra.mxu0 %v326
        %v380 = vpop.f32.mrf.mxu0
        %v381 = vadd.f32 %v332, %v380
        %382 = vmatmul.f32.gmra.mxu0 %v327
        %v383 = vpop.f32.mrf.mxu0
        %v384 = vadd.f32 %v332, %v383
        %385 = vmatmul.f32.gmra.mxu0 %v328
        %v386 = vpop.f32.mrf.mxu0
        %v387 = vadd.f32 %v332, %v386
        %388 = vmatmul.f32.gmra.mxu0 %v329
        %v389 = vpop.f32.mrf.mxu0
        %v390 = vadd.f32 %v332, %v389
        %391 = vmatmul.f32.gmra.mxu0 %v330
        %v392 = vpop.f32.mrf.mxu0
        %v393 = vadd.f32 %v332, %v392
        %394 = vmatmul.f32.gmra.mxu0 %v331
        %v395 = vpop.f32.mrf.mxu0
        %v396 = vadd.f32 %v332, %v395
        %397 = vdwg.mxu0
        %v398 = vmax.f32 %v351, 0.0
        %v399 = vmax.f32 %v354, 0.0
        %v400 = vmax.f32 %v357, 0.0
        %v401 = vmax.f32 %v360, 0.0
        %v402 = vmax.f32 %v363, 0.0
        %v403 = vmax.f32 %v366, 0.0
        %v404 = vmax.f32 %v369, 0.0
        %v405 = vmax.f32 %v372, 0.0
        %v406 = vmax.f32 %v375, 0.0
        %v407 = vmax.f32 %v378, 0.0
        %v408 = vmax.f32 %v381, 0.0
        %v409 = vmax.f32 %v384, 0.0
        %v410 = vmax.f32 %v387, 0.0
        %v411 = vmax.f32 %v390, 0.0
        %v412 = vmax.f32 %v393, 0.0
        %v413 = vmax.f32 %v396, 0.0
        %v414 = vperm.slane %v249, 0
        %415 = vmatpush.msra.mxu0 %v248
        %416 = vmatpush.msra.mxu0 %v247
        %417 = vmatpush.msra.mxu0 %v246
        %418 = vmatpush.msra.mxu0 %v245
        %419 = vmatpush.msra.mxu0 %v244
        %420 = vmatpush.msra.mxu0 %v243
        %421 = vmatpush.msra.mxu0 %v242
        %422 = vmatpush.msra.mxu0 %v241
        %423 = vmatpush.msra.mxu0 %v240
        %424 = vmatpush.msra.mxu0 %v239
        %425 = vmatpush.msra.mxu0 %v238
        %426 = vmatpush.msra.mxu0 %v237
        %427 = vmatpush.msra.mxu0 %v236
        %428 = vmatpush.msra.mxu0 %v235
        %429 = vmatpush.msra.mxu0 %v234
        %430 = vmatpush.msra.mxu0 %v233
        %431 = vmatmul.f32.gmra.mxu0 %v398
        %v432 = vpop.f32.mrf.mxu0
        %v433 = vadd.f32 %v414, %v432
        %434 = vmatmul.f32.gmra.mxu0 %v399
        %v435 = vpop.f32.mrf.mxu0
        %v436 = vadd.f32 %v414, %v435
        %437 = vmatmul.f32.gmra.mxu0 %v400
        %v438 = vpop.f32.mrf.mxu0
        %v439 = vadd.f32 %v414, %v438
        %440 = vmatmul.f32.gmra.mxu0 %v401
        %v441 = vpop.f32.mrf.mxu0
        %v442 = vadd.f32 %v414, %v441
        %443 = vmatmul.f32.gmra.mxu0 %v402
        %v444 = vpop.f32.mrf.mxu0
        %v445 = vadd.f32 %v414, %v444
        %446 = vmatmul.f32.gmra.mxu0 %v403
        %v447 = vpop.f32.mrf.mxu0
        %v448 = vadd.f32 %v414, %v447
        %449 = vmatmul.f32.gmra.mxu0 %v404
        %v450 = vpop.f32.mrf.mxu0
        %v451 = vadd.f32 %v414, %v450
        %452 = vmatmul.f32.gmra.mxu0 %v405
        %v453 = vpop.f32.mrf.mxu0
        %v454 = vadd.f32 %v414, %v453
        %455 = vmatmul.f32.gmra.mxu0 %v406
        %v456 = vpop.f32.mrf.mxu0
        %v457 = vadd.f32 %v414, %v456
        %458 = vmatmul.f32.gmra.mxu0 %v407
        %v459 = vpop.f32.mrf.mxu0
        %v460 = vadd.f32 %v414, %v459
        %461 = vmatmul.f32.gmra.mxu0 %v408
        %v462 = vpop.f32.mrf.mxu0
        %v463 = vadd.f32 %v414, %v462
        %464 = vmatmul.f32.gmra.mxu0 %v409
        %v465 = vpop.f32.mrf.mxu0
        %v466 = vadd.f32 %v414, %v465
        %467 = vmatmul.f32.gmra.mxu0 %v410
        %v468 = vpop.f32.mrf.mxu0
        %v469 = vadd.f32 %v414, %v468
        %470 = vmatmul.f32.gmra.mxu0 %v411
        %v471 = vpop.f32.mrf.mxu0
        %v472 = vadd.f32 %v414, %v471
        %473 = vmatmul.f32.gmra.mxu0 %v412
        %v474 = vpop.f32.mrf.mxu0
        %v475 = vadd.f32 %v414, %v474
        %476 = vmatmul.f32.gmra.mxu0 %v413
        %v477 = vpop.f32.mrf.mxu0
        %v478 = vadd.f32 %v414, %v477
        %479 = vdwg.mxu0
        %480 = vst [vmem:[%s180] sm:$0xff] %v433
        %481 = vst [vmem:[%s180 + $0x8] sm:$0xff] %v436
        %482 = vst [vmem:[%s180 + $0x10] sm:$0xff] %v439
        %483 = vst [vmem:[%s180 + $0x18] sm:$0xff] %v442
        %484 = vst [vmem:[%s180 + $0x20] sm:$0xff] %v445
        %485 = vst [vmem:[%s180 + $0x28] sm:$0xff] %v448
        %486 = vst [vmem:[%s180 + $0x30] sm:$0xff] %v451
        %487 = vst [vmem:[%s180 + $0x38] sm:$0xff] %v454
        %488 = vst [vmem:[%s180 + $0x40] sm:$0xff] %v457
        %489 = vst [vmem:[%s180 + $0x48] sm:$0xff] %v460
        %490 = vst [vmem:[%s180 + $0x50] sm:$0xff] %v463
        %491 = vst [vmem:[%s180 + $0x58] sm:$0xff] %v466
        %492 = vst [vmem:[%s180 + $0x60] sm:$0xff] %v469
        %493 = vst [vmem:[%s180 + $0x68] sm:$0xff] %v472
        %494 = vst [vmem:[%s180 + $0x70] sm:$0xff] %v475
        %495 = vst [vmem:[%s180 + $0x78] sm:$0xff] %v478
        %s496 = sand.u32 %s75, 1
        %s497 = scalar_lea.sflag [#allocation4], %s496
        %s498 = sand.u32 %s75, 1
        %s499 = smul.addr %s498, 128
        %s500 = scalar_lea.vmem [#allocation7], %s499
        // Predicated region
        $region37: #{tpu_custom_call.1} parent=27 // pred_check
          %p501 = pneg %p85
        $region38: #{tpu_custom_call.1} parent=27 // pred_check_branch
          %503 = sbr.rel (%p501) target = $region40
        $region39: #{tpu_custom_call.1} parent=27 // pred_region
          %s504 = smul.u32 16, %s20
          %506 = vsyncadd %s497, 0
          %s507 = smul.addr %s504, 8
          %s508 = scalar_lea.hbm %s2, %s507
          %s509 = sshll.u32 %s500, 4
          %s510 = int_to_ptr.vmem [resolvable:$true] %s509
          %s511 = sshll.u32 %s508, 4
          %s512 = int_to_ptr.hbm [resolvable:$true] %s511
          %517 = dma.vmem_to_hbm [thread:$0]  %s510, 2048, %s512, %s497, 128, 128, 8
        $region40: #{tpu_custom_call.1} parent=27 // pred_fallthru
          _
      $region28: #{tpu_custom_call.1} parent=5 // pred_fallthru
        _
      %p518 = scmp.le.s32.totalorder 2, %s15
      // Predicated region
      $region41: #{tpu_custom_call.1} parent=5 // pred_check
        %p519 = pneg %p518
      $region42: #{tpu_custom_call.1} parent=5 // pred_check_branch
        %521 = sbr.rel (%p519) target = $region44
      $region43: #{tpu_custom_call.1} parent=5 // pred_region
        %s522 = ssub.s32 %s15, 2
        // Predicated region
        $region45: #{tpu_custom_call.1} parent=43 // pred_check
          %p523 = pneg %p91
        $region46: #{tpu_custom_call.1} parent=43 // pred_check_branch
          %525 = sbr.rel (%p523) target = $region48
        $region47: #{tpu_custom_call.1} parent=43 // pred_region
          %s526 = sand.u32 %s76, 1
          %s527 = scalar_lea.sflag [#allocation4], %s526
          %s528 = sand.u32 %s76, 1
          %s529 = smul.addr %s528, 128
          %s530 = scalar_lea.vmem [#allocation7], %s529
          %532 = dma.done %s527, 2048
        $region48: #{tpu_custom_call.1} parent=43 // pred_fallthru
          _
      $region44: #{tpu_custom_call.1} parent=5 // pred_fallthru
        _
    $region6: #{tpu_custom_call.1} parent=1 // loop_footer
      %s19 = sadd.s32 1, %s15
    $region7: #{tpu_custom_call.1} parent=1 // loop_footer_branch
      %14 = sbr.rel target = $region3
    $region8: #{tpu_custom_call.1} parent=1 // loop_exit
      _
    %533 = vsyncpa [#allocation3], 1
    %s534 = scalar_lea.sflag [#allocation3], 1
    %535 = vsyncpa %s534, 1
    %536 = vsyncpa [#allocation6], 1
    %537 = vsyncpa [#allocation4], 1
    %s538 = scalar_lea.sflag [#allocation4], 1
    %539 = vsyncpa %s538, 1

</llo_original>
